<compile_context>
chip_gen: v7x
topology: tpu7x:2x2x1
jax: 0.10.0
libtpu: 0.0.40
codegen_flags: <defaults>
</compile_context>

<pallas_src>
import functools
import math

import jax
import jax.numpy as jnp
from jax import lax
from jax.experimental import pallas as pl
from jax.experimental.pallas import tpu as pltpu

EPS = 1e-5        # torch.nn.LayerNorm default
NEG_INF = -1e30


# ---------------------------------------------------------------------------
# In-kernel helpers
# ---------------------------------------------------------------------------
def _ln(x, g, b):
    mu = jnp.mean(x, axis=-1, keepdims=True)
    var = jnp.mean((x - mu) ** 2, axis=-1, keepdims=True)
    return (x - mu) * lax.rsqrt(var + EPS) * g + b


def _gelu(x):
    # exact (erf-based) GELU, matching torch.nn.GELU() default
    return 0.5 * x * (1.0 + lax.erf(x * (1.0 / math.sqrt(2.0))))


# ---------------------------------------------------------------------------
# Kernels
# ---------------------------------------------------------------------------
def _embed_kernel(st_ref, rtg_ref, te_ref, ae_ref,
                  w_es_ref, b_es_ref, w_er_ref, b_er_ref, g_ref, beta_ref, o_ref):
    """Token embeddings + embed LayerNorm, written slot-major as (3, B*T, H)."""
    te = te_ref[...]
    g, beta = g_ref[...], beta_ref[...]

    se = (jnp.dot(st_ref[...], w_es_ref[...], preferred_element_type=jnp.float32)
          + b_es_ref[...] + te)
    re = rtg_ref[...] * w_er_ref[...] + b_er_ref[...] + te   # (BT,1)*(1,H) == Linear(1,H)
    ae = ae_ref[...] + te

    # embed_ln is per-token, so applying it before the reorder is equivalent.
    # Slot-major writes: full (BT, H) unmasked slabs (no sublane-3 padding).
    o_ref[0] = _ln(re, g, beta)
    o_ref[1] = _ln(se, g, beta)
    o_ref[2] = _ln(ae, g, beta)


def _transformer_kernel(x_ref,
                        wqkv_ref, bqkv_ref, wproj_ref, bproj_ref,
                        ln1g_ref, ln1b_ref, w1_ref, b1_ref, w2_ref, b2_ref,
                        ln2g_ref, ln2b_ref,
                        w_ha_ref, w_hs_ref, bh_ref,
                        preds_ref, h_vmem,
                        *, n_heads, group_batch, context_len):
    """Grid = (batch_group, layer).  Activations resident in the h_vmem scratch."""
    layer = pl.program_id(1)

    @pl.when(layer == 0)
    def _():
        h_vmem[...] = x_ref[0]

    T = context_len
    S = 3 * T
    Bg = group_batch
    R, H = h_vmem.shape                      # R = Bg * S
    hd = H // n_heads
    scale = 1.0 / math.sqrt(hd)

    x = h_vmem[...]                          # (R, H) f32 resident activations
    x_bf = x.astype(jnp.bfloat16)

    # ---- fused QKV projection: one lane-dense (H, 3H) bf16 matmul -----------------
    qkv = jnp.dot(x_bf, wqkv_ref[0], preferred_element_type=jnp.float32) + bqkv_ref[0]

    # ---- causal mask generated in-kernel (S, S), hoisted out of the loops ---------
    row = lax.broadcasted_iota(jnp.int32, (S, S), 0)
    col = lax.broadcasted_iota(jnp.int32, (S, S), 1)
    mask = jnp.where(row >= col, 0.0, NEG_INF).astype(jnp.float32)

    # ---- per-batch-element attention (block-diagonal; no cross-batch scores) ------
    att_rows = []
    for b in range(Bg):
        r0 = b * S
        heads = []
        for n in range(n_heads):
            c0 = n * hd
            qh = qkv[r0:r0 + S, c0:c0 + hd].astype(jnp.bfloat16)
            kh = qkv[r0:r0 + S, H + c0:H + c0 + hd].astype(jnp.bfloat16)
            vh = qkv[r0:r0 + S, 2 * H + c0:2 * H + c0 + hd].astype(jnp.bfloat16)
            s = lax.dot_general(qh, kh, (((1,), (1,)), ((), ())),
                                preferred_element_type=jnp.float32) * scale + mask
            s = s - jnp.max(s, axis=-1, keepdims=True)
            p = jnp.exp(s)
            p = p * pl.reciprocal(jnp.sum(p, axis=-1, keepdims=True), approx=True)
            heads.append(jnp.dot(p.astype(jnp.bfloat16), vh,
                                 preferred_element_type=jnp.float32))
        att_rows.append(jnp.concatenate(heads, axis=1))       # (S, H) concat heads
    att = jnp.concatenate(att_rows, axis=0)                   # (R, H)

    # ---- fused output projection (single (H, H) matmul, K = H) --------------------
    att = jnp.dot(att.astype(jnp.bfloat16), wproj_ref[0],
                  preferred_element_type=jnp.float32) + bproj_ref[0]

    # residual + ln1 (f32)
    y = _ln(x + att, ln1g_ref[0], ln1b_ref[0])

    # ---- MLP, row-chunked per batch element (bounds the (rows, 4H) intermediate) --
    w1, b1 = w1_ref[0], b1_ref[0]
    w2, b2 = w2_ref[0], b2_ref[0]
    ln2g, ln2b = ln2g_ref[0], ln2b_ref[0]
    out_rows = []
    for b in range(Bg):
        yb = y[b * S:(b + 1) * S, :]
        h1 = _gelu(jnp.dot(yb.astype(jnp.bfloat16), w1,
                           preferred_element_type=jnp.float32) + b1)
        h2 = jnp.dot(h1.astype(jnp.bfloat16), w2,
                     preferred_element_type=jnp.float32) + b2
        out_rows.append(_ln(yb + h2, ln2g, ln2b))              # residual + ln2
    h_vmem[...] = jnp.concatenate(out_rows, axis=0)

    # ---- prediction heads fused into the last layer (no HBM round trip for h) -----
    @pl.when(layer == pl.num_programs(1) - 1)
    def _():
        n_rows = Bg * T
        ha = h_vmem[pl.ds(2, n_rows, stride=3), :]   # action-token hiddens (slot 2)
        hs = h_vmem[pl.ds(1, n_rows, stride=3), :]   # state-token hiddens  (slot 1)
        preds_ref[0] = (jnp.dot(ha, w_ha_ref[...], preferred_element_type=jnp.float32)
                        + jnp.dot(hs, w_hs_ref[...], preferred_element_type=jnp.float32)
                        + bh_ref[...])


# ---------------------------------------------------------------------------
# BlockSpec helpers
# ---------------------------------------------------------------------------
def _layer_spec(arr):
    rest = tuple(arr.shape[1:])
    zeros = (0,) * len(rest)
    return pl.BlockSpec((1,) + rest, lambda g, l: (l,) + zeros)


def _const_spec(arr):
    zeros = (0,) * arr.ndim
    return pl.BlockSpec(arr.shape, lambda g, l: zeros)


# ---------------------------------------------------------------------------
# Parameter preparation (one-time layout work, outside the forward pass)
# ---------------------------------------------------------------------------
def prepare_params(raw, n_heads):
    H = raw["embed_state_w"].shape[1]
    sd = raw["predict_state_w"].shape[1]
    ad = raw["predict_action_w"].shape[1]
    L = len(raw["blocks"])
    P = 128 * ((1 + sd + ad + 127) // 128)     # lane-dense padded head width

    def stack(key, dtype=jnp.float32):
        return jnp.stack([blk[key] for blk in raw["blocks"]], axis=0).astype(dtype)

    wqkv = jnp.stack([jnp.concatenate([blk["wq"], blk["wk"], blk["wv"]], axis=1)
                      for blk in raw["blocks"]], axis=0).astype(jnp.bfloat16)   # (L,H,3H)
    bqkv = jnp.stack([jnp.concatenate([blk["bq"], blk["bk"], blk["bv"]], axis=1)
                      for blk in raw["blocks"]], axis=0)                         # (L,1,3H) f32

    prepped = {
        "embed_timestep": raw["embed_timestep"],
        "embed_action": raw["embed_action"],
        "embed_state_w": raw["embed_state_w"], "embed_state_b": raw["embed_state_b"],
        "embed_rtg_w": raw["embed_rtg_w"], "embed_rtg_b": raw["embed_rtg_b"],
        "embed_ln_g": raw["embed_ln_g"], "embed_ln_b": raw["embed_ln_b"],
        # stacked per-layer weights; matmul operands stored bf16, LN/bias f32
        "wqkv": wqkv, "bqkv": bqkv,
        "wproj": stack("wp", jnp.bfloat16), "bproj": stack("bp"),
        "ln1g": stack("ln1g"), "ln1b": stack("ln1b"),
        "w1": stack("w1", jnp.bfloat16), "b1": stack("b1"),
        "w2": stack("w2", jnp.bfloat16), "b2": stack("b2"),
        "ln2g": stack("ln2g"), "ln2b": stack("ln2b"),
        "n_heads": n_heads, "n_layers": L, "head_dim": H // n_heads,
        "state_dim": sd, "act_dim": ad, "head_pad": P,
    }

    # fused, lane-padded prediction heads:
    #   cols [0]           <- predict_rtg    (applied to action-token hidden)
    #   cols [1 : 1+sd]    <- predict_state  (applied to action-token hidden)
    #   cols [1+sd : +ad]  <- predict_action (applied to state-token hidden)
    w_ha = jnp.zeros((H, P), jnp.float32)
    w_ha = w_ha.at[:, 0:1].set(raw["predict_rtg_w"]).at[:, 1:1 + sd].set(raw["predict_state_w"])
    w_hs = jnp.zeros((H, P), jnp.float32).at[:, 1 + sd:1 + sd + ad].set(raw["predict_action_w"])
    b_h = jnp.zeros((1, P), jnp.float32)
    b_h = (b_h.at[:, 0:1].set(raw["predict_rtg_b"])
              .at[:, 1:1 + sd].set(raw["predict_state_b"])
              .at[:, 1 + sd:1 + sd + ad].set(raw["predict_action_b"]))
    prepped["head_w_act_tok"] = w_ha
    prepped["head_w_state_tok"] = w_hs
    prepped["head_b"] = b_h
    return prepped


# ---------------------------------------------------------------------------
# Forward pass (Pallas)
# ---------------------------------------------------------------------------
def dt_forward(prepped, timesteps, states, actions, returns_to_go):
    B, T, state_dim = states.shape
    H = prepped["embed_state_w"].shape[1]
    S = 3 * T
    BT = B * T
    L = prepped["n_layers"]
    n_heads = prepped["n_heads"]
    sd = prepped["state_dim"]
    ad = prepped["act_dim"]
    P = prepped["head_pad"]

    # batch groups: feeds v7x's 2 TensorCores; serial (harmless) on v5e/v6e
    n_groups = 2 if B % 2 == 0 else 1
    Bg = B // n_groups
    R = Bg * S

    # embedding-table gathers (XLA glue)
    time_emb = prepped["embed_timestep"][timesteps].reshape(BT, H)
    act_emb = prepped["embed_action"][actions].reshape(BT, H)

    # --- token embedding + embed LayerNorm, slot-major (3, BT, H) output -----------
    emb = pl.pallas_call(
        _embed_kernel,
        out_shape=jax.ShapeDtypeStruct((3, BT, H), jnp.float32),
    )(states.reshape(BT, state_dim), returns_to_go.reshape(BT, 1),
      time_emb, act_emb,
      prepped["embed_state_w"], prepped["embed_state_b"],
      prepped["embed_rtg_w"], prepped["embed_rtg_b"],
      prepped["embed_ln_g"], prepped["embed_ln_b"])

    # cheap one-time reorder to token-interleaved (R, S, A) rows, grouped for the grid
    h0 = emb.reshape(3, B, T, H).transpose(1, 2, 0, 3).reshape(n_groups, R, H)

    # --- fused transformer stack + prediction heads: one pallas_call ---------------
    weight_keys = ("wqkv", "bqkv", "wproj", "bproj",
                   "ln1g", "ln1b", "w1", "b1", "w2", "b2", "ln2g", "ln2b")
    weights = [prepped[k] for k in weight_keys]
    head_args = [prepped["head_w_act_tok"], prepped["head_w_state_tok"], prepped["head_b"]]

    kernel = functools.partial(_transformer_kernel,
                               n_heads=n_heads, group_batch=Bg, context_len=T)

    preds = pl.pallas_call(
        kernel,
        grid=(n_groups, L),
        in_specs=[pl.BlockSpec((1, R, H), lambda g, l: (g, 0, 0))]
                 + [_layer_spec(w) for w in weights]
                 + [_const_spec(a) for a in head_args],
        out_specs=pl.BlockSpec((1, Bg * T, P), lambda g, l: (g, 0, 0)),
        out_shape=jax.ShapeDtypeStruct((n_groups, Bg * T, P), jnp.float32),
        scratch_shapes=[pltpu.VMEM((R, H), jnp.float32)],
        compiler_params=pltpu.CompilerParams(
            dimension_semantics=("parallel", "arbitrary"),
            vmem_limit_bytes=48 * 1024 * 1024),
    )(h0, *weights, *head_args)

    preds = preds.reshape(B, T, P)
    return_preds = preds[:, :, 0:1]
    state_preds = preds[:, :, 1:1 + sd]
    action_preds = preds[:, :, 1 + sd:1 + sd + ad]

    # same return order as the PyTorch module
    return state_preds, action_preds, return_preds


# ---------------------------------------------------------------------------
# Pure-JAX reference (for correctness check)
# ---------------------------------------------------------------------------
def dt_forward_ref(params, timesteps, states, actions, returns_to_go, n_heads):
    B, T, _ = states.shape
    H = params["embed_state_w"].shape[1]
    S = 3 * T
    D = H // n_heads

    te = params["embed_timestep"][timesteps]
    se = states @ params["embed_state_w"] + params["embed_state_b"] + te
    ae = params["embed_action"][actions] + te
    re = returns_to_go @ params["embed_rtg_w"] + params["embed_rtg_b"] + te
    h = jnp.stack([re, se, ae], axis=1).transpose(0, 2, 1, 3).reshape(B, S, H)
    h = _ln(h, params["embed_ln_g"], params["embed_ln_b"])

    row = jnp.arange(S)[:, None]
    col = jnp.arange(S)[None, :]
    causal = row >= col

    for bp in params["blocks"]:
        q = (h @ bp["wq"] + bp["bq"]).reshape(B, S, n_heads, D).transpose(0, 2, 1, 3)
        k = (h @ bp["wk"] + bp["bk"]).reshape(B, S, n_heads, D).transpose(0, 2, 1, 3)
        v = (h @ bp["wv"] + bp["bv"]).reshape(B, S, n_heads, D).transpose(0, 2, 1, 3)
        w = jnp.einsum("bnsd,bntd->bnst", q, k) / math.sqrt(D)
        w = jnp.where(causal, w, NEG_INF)
        w = w - jnp.max(w, axis=-1, keepdims=True)
        p = jnp.exp(w)
        p = p / jnp.sum(p, axis=-1, keepdims=True)
        att = jnp.einsum("bnst,bntd->bnsd", p, v).transpose(0, 2, 1, 3).reshape(B, S, H)
        att = att @ bp["wp"] + bp["bp"]
        h = _ln(h + att, bp["ln1g"], bp["ln1b"])
        m = _gelu(h @ bp["w1"] + bp["b1"]) @ bp["w2"] + bp["b2"]
        h = _ln(h + m, bp["ln2g"], bp["ln2b"])

    h4 = h.reshape(B, T, 3, H).transpose(0, 2, 1, 3)
    return_preds = h4[:, 2] @ params["predict_rtg_w"] + params["predict_rtg_b"]
    state_preds = h4[:, 2] @ params["predict_state_w"] + params["predict_state_b"]
    action_preds = h4[:, 1] @ params["predict_action_w"] + params["predict_action_b"]
    return state_preds, action_preds, return_preds


# ---------------------------------------------------------------------------
# Deterministic parameter init (natural PyTorch-like layout)
# ---------------------------------------------------------------------------
def init_params(key, state_dim, act_dim, n_blocks, h_dim, n_heads, max_timestep):
    def nrm(k, shape, scale=0.05):
        return (scale * jax.random.normal(k, shape)).astype(jnp.float32)

    keys = iter(jax.random.split(key, 64 + 32 * n_blocks))
    params = {
        "embed_timestep": nrm(next(keys), (max_timestep, h_dim)),
        "embed_action": nrm(next(keys), (act_dim, h_dim)),
        "embed_state_w": nrm(next(keys), (state_dim, h_dim)),
        "embed_state_b": nrm(next(keys), (1, h_dim)),
        "embed_rtg_w": nrm(next(keys), (1, h_dim)),
        "embed_rtg_b": nrm(next(keys), (1, h_dim)),
        "embed_ln_g": jnp.ones((1, h_dim), jnp.float32),
        "embed_ln_b": jnp.zeros((1, h_dim), jnp.float32),
        "predict_rtg_w": nrm(next(keys), (h_dim, 1)),
        "predict_rtg_b": nrm(next(keys), (1, 1)),
        "predict_state_w": nrm(next(keys), (h_dim, state_dim)),
        "predict_state_b": nrm(next(keys), (1, state_dim)),
        "predict_action_w": nrm(next(keys), (h_dim, act_dim)),
        "predict_action_b": nrm(next(keys), (1, act_dim)),
        "blocks": [],
    }
    for _ in range(n_blocks):
        params["blocks"].append({
            "wq": nrm(next(keys), (h_dim, h_dim)), "bq": nrm(next(keys), (1, h_dim)),
            "wk": nrm(next(keys), (h_dim, h_dim)), "bk": nrm(next(keys), (1, h_dim)),
            "wv": nrm(next(keys), (h_dim, h_dim)), "bv": nrm(next(keys), (1, h_dim)),
            "wp": nrm(next(keys), (h_dim, h_dim)), "bp": nrm(next(keys), (1, h_dim)),
            "ln1g": jnp.ones((1, h_dim), jnp.float32),
            "ln1b": jnp.zeros((1, h_dim), jnp.float32),
            "w1": nrm(next(keys), (h_dim, 4 * h_dim)), "b1": nrm(next(keys), (1, 4 * h_dim)),
            "w2": nrm(next(keys), (4 * h_dim, h_dim)), "b2": nrm(next(keys), (1, h_dim)),
            "ln2g": jnp.ones((1, h_dim), jnp.float32),
            "ln2b": jnp.zeros((1, h_dim), jnp.float32),
        })
    return params


# ---------------------------------------------------------------------------
if __name__ == "__main__":
    B, T = 2, 6            # batch, context_len
    state_dim, act_dim = 3, 2
    h_dim, n_heads, n_blocks = 32, 2, 2
    max_timestep = 64

    key = jax.random.PRNGKey(0)
    kp, kt, ks, ka, kr = jax.random.split(key, 5)

    raw = init_params(kp, state_dim, act_dim, n_blocks, h_dim, n_heads, max_timestep)
    prepped = prepare_params(raw, n_heads)

    timesteps = jax.random.randint(kt, (B, T), 0, max_timestep, dtype=jnp.int32)
    states = jax.random.normal(ks, (B, T, state_dim), dtype=jnp.float32)
    actions = jax.random.randint(ka, (B, T), 0, act_dim, dtype=jnp.int32)
    returns_to_go = jax.random.uniform(kr, (B, T, 1), dtype=jnp.float32)

    state_preds, action_preds, return_preds = dt_forward(
        prepped, timesteps, states, actions, returns_to_go)
    jax.block_until_ready((state_preds, action_preds, return_preds))

    # shape checks (mirror the PyTorch docstring asserts)
    assert state_preds.shape == (B, T, state_dim)
    assert action_preds.shape == (B, T, act_dim)
    assert return_preds.shape == (B, T, 1)

    # numerical check against a pure-JAX f32 reference
    # (tolerance accounts for bf16 matmul operands + approx EUP reciprocal in softmax)
    sp_r, ap_r, rp_r = dt_forward_ref(raw, timesteps, states, actions,
                                      returns_to_go, n_heads)
    for got, ref in ((state_preds, sp_r), (action_preds, ap_r), (return_preds, rp_r)):
        assert jnp.allclose(got, ref, rtol=4e-2, atol=4e-2), "mismatch vs reference"

    print("KERNEL_OK")
</pallas_src>

<mosaic_0001>
module attributes {stable_mosaic.version = 11 : i64} {
  func.func @_embed_kernel(%arg0: memref<12x3xf32, #tpu.memory_space<vmem>>, %arg1: memref<12x1xf32, #tpu.memory_space<vmem>>, %arg2: memref<12x32xf32, #tpu.memory_space<vmem>>, %arg3: memref<12x32xf32, #tpu.memory_space<vmem>>, %arg4: memref<3x32xf32, #tpu.memory_space<vmem>>, %arg5: memref<1x32xf32, #tpu.memory_space<vmem>>, %arg6: memref<1x32xf32, #tpu.memory_space<vmem>>, %arg7: memref<1x32xf32, #tpu.memory_space<vmem>>, %arg8: memref<1x32xf32, #tpu.memory_space<vmem>>, %arg9: memref<1x32xf32, #tpu.memory_space<vmem>>, %arg10: memref<3x12x32xf32, #tpu.memory_space<vmem>>) attributes {dimension_semantics = [], scalar_prefetch = 0 : i64, scratch_operands = 0 : i64, tpu.core_type = #tpu.core_type<tc>} {
    %c0 = arith.constant 0 : index
    %c0_0 = arith.constant 0 : index
    %0 = vector.load %arg2[%c0, %c0_0] : memref<12x32xf32, #tpu.memory_space<vmem>>, vector<12x32xf32>
    %c0_1 = arith.constant 0 : index
    %c0_2 = arith.constant 0 : index
    %1 = vector.load %arg8[%c0_1, %c0_2] : memref<1x32xf32, #tpu.memory_space<vmem>>, vector<1x32xf32>
    %c0_3 = arith.constant 0 : index
    %c0_4 = arith.constant 0 : index
    %2 = vector.load %arg9[%c0_3, %c0_4] : memref<1x32xf32, #tpu.memory_space<vmem>>, vector<1x32xf32>
    %c0_5 = arith.constant 0 : index
    %c0_6 = arith.constant 0 : index
    %3 = vector.load %arg0[%c0_5, %c0_6] : memref<12x3xf32, #tpu.memory_space<vmem>>, vector<12x3xf32>
    %c0_7 = arith.constant 0 : index
    %c0_8 = arith.constant 0 : index
    %4 = vector.load %arg4[%c0_7, %c0_8] : memref<3x32xf32, #tpu.memory_space<vmem>>, vector<3x32xf32>
    %cst = arith.constant dense<0.000000e+00> : vector<12x32xf32>
    %5 = tpu.matmul %3, %4, %cst {dimension_numbers = #tpu.dot_dimension_numbers<[1], [0], [0], [1], [0, 0, 1, 1], [], []>} : vector<12x3xf32>, vector<3x32xf32>, vector<12x32xf32> -> vector<12x32xf32>
    %c0_9 = arith.constant 0 : index
    %c0_10 = arith.constant 0 : index
    %6 = vector.load %arg5[%c0_9, %c0_10] : memref<1x32xf32, #tpu.memory_space<vmem>>, vector<1x32xf32>
    %7 = vector.broadcast %6 : vector<1x32xf32> to vector<12x32xf32>
    %8 = arith.addf %5, %7 : vector<12x32xf32>
    %9 = arith.addf %8, %0 : vector<12x32xf32>
    %c0_11 = arith.constant 0 : index
    %c0_12 = arith.constant 0 : index
    %10 = vector.load %arg1[%c0_11, %c0_12] : memref<12x1xf32, #tpu.memory_space<vmem>>, vector<12x1xf32>
    %c0_13 = arith.constant 0 : index
    %c0_14 = arith.constant 0 : index
    %11 = vector.load %arg6[%c0_13, %c0_14] : memref<1x32xf32, #tpu.memory_space<vmem>>, vector<1x32xf32>
    %12 = vector.broadcast %10 : vector<12x1xf32> to vector<12x32xf32>
    %13 = vector.broadcast %11 : vector<1x32xf32> to vector<12x32xf32>
    %14 = arith.mulf %12, %13 : vector<12x32xf32>
    %c0_15 = arith.constant 0 : index
    %c0_16 = arith.constant 0 : index
    %15 = vector.load %arg7[%c0_15, %c0_16] : memref<1x32xf32, #tpu.memory_space<vmem>>, vector<1x32xf32>
    %16 = vector.broadcast %15 : vector<1x32xf32> to vector<12x32xf32>
    %17 = arith.addf %14, %16 : vector<12x32xf32>
    %18 = arith.addf %17, %0 : vector<12x32xf32>
    %c0_17 = arith.constant 0 : index
    %c0_18 = arith.constant 0 : index
    %19 = vector.load %arg3[%c0_17, %c0_18] : memref<12x32xf32, #tpu.memory_space<vmem>>, vector<12x32xf32>
    %20 = arith.addf %19, %0 : vector<12x32xf32>
    %cst_19 = arith.constant dense<0.000000e+00> : vector<12xf32>
    %21 = vector.multi_reduction <add>, %18, %cst_19 [1] : vector<12x32xf32> to vector<12xf32>
    %22 = vector.shape_cast %21 : vector<12xf32> to vector<12x1xf32>
    %cst_20 = arith.constant 3.200000e+01 : f32
    %23 = vector.broadcast %cst_20 : f32 to vector<12x1xf32>
    %24 = arith.divf %22, %23 : vector<12x1xf32>
    %25 = vector.broadcast %24 : vector<12x1xf32> to vector<12x32xf32>
    %26 = arith.subf %18, %25 : vector<12x32xf32>
    %27 = arith.mulf %26, %26 : vector<12x32xf32>
    %cst_21 = arith.constant dense<0.000000e+00> : vector<12xf32>
    %28 = vector.multi_reduction <add>, %27, %cst_21 [1] : vector<12x32xf32> to vector<12xf32>
    %29 = vector.shape_cast %28 : vector<12xf32> to vector<12x1xf32>
    %cst_22 = arith.constant 3.200000e+01 : f32
    %30 = vector.broadcast %cst_22 : f32 to vector<12x1xf32>
    %31 = arith.divf %29, %30 : vector<12x1xf32>
    %32 = vector.broadcast %24 : vector<12x1xf32> to vector<12x32xf32>
    %33 = arith.subf %18, %32 : vector<12x32xf32>
    %cst_23 = arith.constant 9.99999974E-6 : f32
    %34 = vector.broadcast %cst_23 : f32 to vector<12x1xf32>
    %35 = arith.addf %31, %34 : vector<12x1xf32>
    %36 = math.rsqrt %35 : vector<12x1xf32>
    %37 = vector.broadcast %36 : vector<12x1xf32> to vector<12x32xf32>
    %38 = arith.mulf %33, %37 : vector<12x32xf32>
    %39 = vector.broadcast %1 : vector<1x32xf32> to vector<12x32xf32>
    %40 = arith.mulf %38, %39 : vector<12x32xf32>
    %41 = vector.broadcast %2 : vector<1x32xf32> to vector<12x32xf32>
    %42 = arith.addf %40, %41 : vector<12x32xf32>
    %c0_24 = arith.constant 0 : index
    %c0_25 = arith.constant 0 : index
    %c0_26 = arith.constant 0 : index
    %43 = vector.load %arg10[%c0_24, %c0_25, %c0_26] : memref<3x12x32xf32, #tpu.memory_space<vmem>>, vector<1x12x32xf32>
    %44 = vector.shape_cast %43 : vector<1x12x32xf32> to vector<12x32xf32>
    %45 = vector.shape_cast %42 : vector<12x32xf32> to vector<1x12x32xf32>
    tpu.vector_store %arg10[%c0_24, %c0_25, %c0_26], %45 {strides = array<i32>} : memref<3x12x32xf32, #tpu.memory_space<vmem>>, vector<1x12x32xf32>,
    %cst_27 = arith.constant dense<0.000000e+00> : vector<12xf32>
    %46 = vector.multi_reduction <add>, %9, %cst_27 [1] : vector<12x32xf32> to vector<12xf32>
    %47 = vector.shape_cast %46 : vector<12xf32> to vector<12x1xf32>
    %cst_28 = arith.constant 3.200000e+01 : f32
    %48 = vector.broadcast %cst_28 : f32 to vector<12x1xf32>
    %49 = arith.divf %47, %48 : vector<12x1xf32>
    %50 = vector.broadcast %49 : vector<12x1xf32> to vector<12x32xf32>
    %51 = arith.subf %9, %50 : vector<12x32xf32>
    %52 = arith.mulf %51, %51 : vector<12x32xf32>
    %cst_29 = arith.constant dense<0.000000e+00> : vector<12xf32>
    %53 = vector.multi_reduction <add>, %52, %cst_29 [1] : vector<12x32xf32> to vector<12xf32>
    %54 = vector.shape_cast %53 : vector<12xf32> to vector<12x1xf32>
    %cst_30 = arith.constant 3.200000e+01 : f32
    %55 = vector.broadcast %cst_30 : f32 to vector<12x1xf32>
    %56 = arith.divf %54, %55 : vector<12x1xf32>
    %57 = vector.broadcast %49 : vector<12x1xf32> to vector<12x32xf32>
    %58 = arith.subf %9, %57 : vector<12x32xf32>
    %cst_31 = arith.constant 9.99999974E-6 : f32
    %59 = vector.broadcast %cst_31 : f32 to vector<12x1xf32>
    %60 = arith.addf %56, %59 : vector<12x1xf32>
    %61 = math.rsqrt %60 : vector<12x1xf32>
    %62 = vector.broadcast %61 : vector<12x1xf32> to vector<12x32xf32>
    %63 = arith.mulf %58, %62 : vector<12x32xf32>
    %64 = vector.broadcast %1 : vector<1x32xf32> to vector<12x32xf32>
    %65 = arith.mulf %63, %64 : vector<12x32xf32>
    %66 = vector.broadcast %2 : vector<1x32xf32> to vector<12x32xf32>
    %67 = arith.addf %65, %66 : vector<12x32xf32>
    %c1 = arith.constant 1 : index
    %c0_32 = arith.constant 0 : index
    %c0_33 = arith.constant 0 : index
    %68 = vector.load %arg10[%c1, %c0_32, %c0_33] : memref<3x12x32xf32, #tpu.memory_space<vmem>>, vector<1x12x32xf32>
    %69 = vector.shape_cast %68 : vector<1x12x32xf32> to vector<12x32xf32>
    %70 = vector.shape_cast %67 : vector<12x32xf32> to vector<1x12x32xf32>
    tpu.vector_store %arg10[%c1, %c0_32, %c0_33], %70 {strides = array<i32>} : memref<3x12x32xf32, #tpu.memory_space<vmem>>, vector<1x12x32xf32>,
    %cst_34 = arith.constant dense<0.000000e+00> : vector<12xf32>
    %71 = vector.multi_reduction <add>, %20, %cst_34 [1] : vector<12x32xf32> to vector<12xf32>
    %72 = vector.shape_cast %71 : vector<12xf32> to vector<12x1xf32>
    %cst_35 = arith.constant 3.200000e+01 : f32
    %73 = vector.broadcast %cst_35 : f32 to vector<12x1xf32>
    %74 = arith.divf %72, %73 : vector<12x1xf32>
    %75 = vector.broadcast %74 : vector<12x1xf32> to vector<12x32xf32>
    %76 = arith.subf %20, %75 : vector<12x32xf32>
    %77 = arith.mulf %76, %76 : vector<12x32xf32>
    %cst_36 = arith.constant dense<0.000000e+00> : vector<12xf32>
    %78 = vector.multi_reduction <add>, %77, %cst_36 [1] : vector<12x32xf32> to vector<12xf32>
    %79 = vector.shape_cast %78 : vector<12xf32> to vector<12x1xf32>
    %cst_37 = arith.constant 3.200000e+01 : f32
    %80 = vector.broadcast %cst_37 : f32 to vector<12x1xf32>
    %81 = arith.divf %79, %80 : vector<12x1xf32>
    %82 = vector.broadcast %74 : vector<12x1xf32> to vector<12x32xf32>
    %83 = arith.subf %20, %82 : vector<12x32xf32>
    %cst_38 = arith.constant 9.99999974E-6 : f32
    %84 = vector.broadcast %cst_38 : f32 to vector<12x1xf32>
    %85 = arith.addf %81, %84 : vector<12x1xf32>
    %86 = math.rsqrt %85 : vector<12x1xf32>
    %87 = vector.broadcast %86 : vector<12x1xf32> to vector<12x32xf32>
    %88 = arith.mulf %83, %87 : vector<12x32xf32>
    %89 = vector.broadcast %1 : vector<1x32xf32> to vector<12x32xf32>
    %90 = arith.mulf %88, %89 : vector<12x32xf32>
    %91 = vector.broadcast %2 : vector<1x32xf32> to vector<12x32xf32>
    %92 = arith.addf %90, %91 : vector<12x32xf32>
    %c2 = arith.constant 2 : index
    %c0_39 = arith.constant 0 : index
    %c0_40 = arith.constant 0 : index
    %93 = vector.load %arg10[%c2, %c0_39, %c0_40] : memref<3x12x32xf32, #tpu.memory_space<vmem>>, vector<1x12x32xf32>
    %94 = vector.shape_cast %93 : vector<1x12x32xf32> to vector<12x32xf32>
    %95 = vector.shape_cast %92 : vector<12x32xf32> to vector<1x12x32xf32>
    tpu.vector_store %arg10[%c2, %c0_39, %c0_40], %95 {strides = array<i32>} : memref<3x12x32xf32, #tpu.memory_space<vmem>>, vector<1x12x32xf32>,
    return
  }
}

</mosaic_0001>

<llo_original>
// kernel: tpu_custom_call.1
$region0: #{tpu_custom_call.1}
  #allocation0 [shape = 'u32[]', space=smem, size = 0x4, offset = 0x4, fixed_abs, tag = 'smem constant byte address 0x4 - core index']
  #allocation1 [shape = 'u32[144,128]{1,0:T(1,128)}', space=vmem, size = 0x12000, scoped, tag = 'internal scratch']
  %s0 = inlined_call_operand.vmem [shape: f32[12,3], index: 0, kind: input, shape index: {}]
  %s1 = inlined_call_operand.vmem [shape: f32[12,1], index: 1, kind: input, shape index: {}]
  %s2 = inlined_call_operand.vmem [shape: f32[12,32], index: 2, kind: input, shape index: {}]
  %s3 = inlined_call_operand.vmem [shape: f32[12,32], index: 3, kind: input, shape index: {}]
  %s4 = inlined_call_operand.vmem [shape: f32[3,32], index: 4, kind: input, shape index: {}]
  %s5 = inlined_call_operand.vmem [shape: f32[1,32], index: 5, kind: input, shape index: {}]
  %s6 = inlined_call_operand.vmem [shape: f32[1,32], index: 6, kind: input, shape index: {}]
  %s7 = inlined_call_operand.vmem [shape: f32[1,32], index: 7, kind: input, shape index: {}]
  %s8 = inlined_call_operand.vmem [shape: f32[1,32], index: 8, kind: input, shape index: {}]
  %s9 = inlined_call_operand.vmem [shape: f32[1,32], index: 9, kind: input, shape index: {}]
  %s10 = inlined_call_operand.hbm [shape: f32[3,12,32], index: 10, kind: output, shape index: {}]
  %s11 = sld [smem:[#allocation0]]
  $region50: #{tpu_custom_call.1} parent=0
    _
  %s13 = ssub.s32 1, %s11
  %s14 = scalar_select 0, %s13, %s11
  $region1: #{tpu_custom_call.1} parent=0
    #allocation2 [shape = 'u8[24576]{0}', space=vmem, size = 0x6000, scoped, tag = 'output window, operand 0, single buffered']
    #allocation3 [shape = 's32[1]{0}', space=sflag, size = 0x4, scoped, tag = 'scoped memory for tpu_custom_call.1']
    %15 = vsyncpa [#allocation3], 0
    // Predicated region
    $region2: #{tpu_custom_call.1} parent=1 // pred_check
      _
    $region3: #{tpu_custom_call.1} parent=1 // pred_check_branch
      %17 = sbr.rel (0) target = $region5
    $region4: #{tpu_custom_call.1} parent=1 // pred_region
      _
    $region5: #{tpu_custom_call.1} parent=1 // pred_fallthru
      _
    // Predicated region
    $region6: #{tpu_custom_call.1} parent=1 // pred_check
      _
    $region7: #{tpu_custom_call.1} parent=1 // pred_check_branch
      %19 = sbr.rel (0) target = $region9
    $region8: #{tpu_custom_call.1} parent=1 // pred_region
      _
    $region9: #{tpu_custom_call.1} parent=1 // pred_fallthru
      _
    // Predicated region
    $region10: #{tpu_custom_call.1} parent=1 // pred_check
      _
    $region11: #{tpu_custom_call.1} parent=1 // pred_check_branch
      %21 = sbr.rel (0) target = $region13
    $region12: #{tpu_custom_call.1} parent=1 // pred_region
      _
    $region13: #{tpu_custom_call.1} parent=1 // pred_fallthru
      _
    // Predicated region
    $region14: #{tpu_custom_call.1} parent=1 // pred_check
      _
    $region15: #{tpu_custom_call.1} parent=1 // pred_check_branch
      %23 = sbr.rel (0) target = $region17
    $region16: #{tpu_custom_call.1} parent=1 // pred_region
      _
    $region17: #{tpu_custom_call.1} parent=1 // pred_fallthru
      _
    // Predicated region
    $region18: #{tpu_custom_call.1} parent=1 // pred_check
      _
    $region19: #{tpu_custom_call.1} parent=1 // pred_check_branch
      %25 = sbr.rel (0) target = $region21
    $region20: #{tpu_custom_call.1} parent=1 // pred_region
      _
    $region21: #{tpu_custom_call.1} parent=1 // pred_fallthru
      _
    // Predicated region
    $region22: #{tpu_custom_call.1} parent=1 // pred_check
      _
    $region23: #{tpu_custom_call.1} parent=1 // pred_check_branch
      %27 = sbr.rel (0) target = $region25
    $region24: #{tpu_custom_call.1} parent=1 // pred_region
      _
    $region25: #{tpu_custom_call.1} parent=1 // pred_fallthru
      _
    // Predicated region
    $region26: #{tpu_custom_call.1} parent=1 // pred_check
      _
    $region27: #{tpu_custom_call.1} parent=1 // pred_check_branch
      %29 = sbr.rel (0) target = $region29
    $region28: #{tpu_custom_call.1} parent=1 // pred_region
      _
    $region29: #{tpu_custom_call.1} parent=1 // pred_fallthru
      _
    // Predicated region
    $region30: #{tpu_custom_call.1} parent=1 // pred_check
      _
    $region31: #{tpu_custom_call.1} parent=1 // pred_check_branch
      %31 = sbr.rel (0) target = $region33
    $region32: #{tpu_custom_call.1} parent=1 // pred_region
      _
    $region33: #{tpu_custom_call.1} parent=1 // pred_fallthru
      _
    // Predicated region
    $region34: #{tpu_custom_call.1} parent=1 // pred_check
      _
    $region35: #{tpu_custom_call.1} parent=1 // pred_check_branch
      %33 = sbr.rel (0) target = $region37
    $region36: #{tpu_custom_call.1} parent=1 // pred_region
      _
    $region37: #{tpu_custom_call.1} parent=1 // pred_fallthru
      _
    // Predicated region
    $region38: #{tpu_custom_call.1} parent=1 // pred_check
      _
    $region39: #{tpu_custom_call.1} parent=1 // pred_check_branch
      %35 = sbr.rel (0) target = $region41
    $region40: #{tpu_custom_call.1} parent=1 // pred_region
      _
    $region41: #{tpu_custom_call.1} parent=1 // pred_fallthru
      _
    %v36 = vld [vmem:[%s2] sm:$0xff]
    %v37 = vld [vmem:[%s2 + $0x8] sm:$0xf]
    %v38 = vld [vmem:[%s8] sm:$0x1]
    %v39 = vld [vmem:[%s9] sm:$0x1]
    %v40 = vld [vmem:[%s0] sm:$0xff]
    %v41 = vld [vmem:[%s0 + $0x8] sm:$0xf]
    %v42 = vld [vmem:[%s4] sm:$0x7]
    %v43 = vld [vmem:[%s5] sm:$0x1]
    %v45 = vlaneseq
    %v46 = vshrl.u32 %v45, 7
    %v47 = vsub.s32 0, %v46
    %v48 = vrot.slane %v43, %v47
    %vm50 = vcmask 23552
    %v52 = vsel %vm50, %v40, 0
    %v55 = vsel %vm50, %v41, 0
    %vm57 = vcmask 1042432
    %v59 = vsel %vm57, %v42, 0
    %61 = vmatprep.subr.mxu0 0.0
    %62 = vmatpush1.msra.mxu0 %v59
    %63 = vmatprep.subr.mxu0 0.0
    %64 = vmatpush1.msra.mxu0 0.0
    %65 = vmatprep.subr.mxu0 0.0
    %66 = vmatpush1.msra.mxu0 0.0
    %67 = vmatprep.subr.mxu0 0.0
    %68 = vmatpush1.msra.mxu0 0.0
    %69 = vmatprep.subr.mxu0 0.0
    %70 = vmatpush1.msra.mxu0 0.0
    %71 = vmatprep.subr.mxu0 0.0
    %72 = vmatpush1.msra.mxu0 0.0
    %73 = vmatprep.subr.mxu0 0.0
    %74 = vmatpush1.msra.mxu0 0.0
    %75 = vmatprep.subr.mxu0 0.0
    %76 = vmatpush1.msra.mxu0 0.0
    %77 = vmatprep.subr.mxu0 0.0
    %78 = vmatpush1.msra.mxu0 0.0
    %79 = vmatprep.subr.mxu0 0.0
    %80 = vmatpush1.msra.mxu0 0.0
    %81 = vmatprep.subr.mxu0 0.0
    %82 = vmatpush1.msra.mxu0 0.0
    %83 = vmatprep.subr.mxu0 0.0
    %84 = vmatpush1.msra.mxu0 0.0
    %85 = vmatprep.subr.mxu0 0.0
    %86 = vmatpush1.msra.mxu0 0.0
    %87 = vmatprep.subr.mxu0 0.0
    %88 = vmatpush1.msra.mxu0 0.0
    %89 = vmatprep.subr.mxu0 0.0
    %90 = vmatpush1.msra.mxu0 0.0
    %91 = vmatprep.subr.mxu0 0.0
    %92 = vmatpush1.msra.mxu0 0.0
    %93 = vmatprep.subr.mxu0 0.0
    %94 = vmatpush1.msra.mxu0 0.0
    %95 = vmatprep.subr.mxu0 0.0
    %96 = vmatpush1.msra.mxu0 0.0
    %97 = vmatprep.subr.mxu0 0.0
    %98 = vmatpush1.msra.mxu0 0.0
    %99 = vmatprep.subr.mxu0 0.0
    %100 = vmatpush1.msra.mxu0 0.0
    %101 = vmatprep.subr.mxu0 0.0
    %102 = vmatpush1.msra.mxu0 0.0
    %103 = vmatprep.subr.mxu0 0.0
    %104 = vmatpush1.msra.mxu0 0.0
    %105 = vmatprep.subr.mxu0 0.0
    %106 = vmatpush1.msra.mxu0 0.0
    %107 = vmatprep.subr.mxu0 0.0
    %108 = vmatpush1.msra.mxu0 0.0
    %109 = vmatprep.subr.mxu0 0.0
    %110 = vmatpush1.msra.mxu0 0.0
    %111 = vmatprep.subr.mxu0 0.0
    %112 = vmatpush1.msra.mxu0 0.0
    %113 = vmatprep.subr.mxu0 0.0
    %114 = vmatpush1.msra.mxu0 0.0
    %115 = vmatprep.subr.mxu0 0.0
    %116 = vmatpush1.msra.mxu0 0.0
    %117 = vmatprep.subr.mxu0 0.0
    %118 = vmatpush1.msra.mxu0 0.0
    %119 = vmatprep.subr.mxu0 0.0
    %120 = vmatpush1.msra.mxu0 0.0
    %121 = vmatprep.subr.mxu0 0.0
    %122 = vmatpush1.msra.mxu0 0.0
    %123 = vmatprep.subr.mxu0 0.0
    %124 = vmatpush1.msra.mxu0 0.0
    %125 = vmatprep.mubr.f32.mxu0 0.0
    %126 = vmatmul.mubr.f32.gmra.mrb[0].mxu0 %v52
    %v127 = vpop.f32.mrb[0].mxu0
    %v128 = vadd.f32 %v48, %v127
    %v129 = vpop.f32.mrb[0].mxu0
    %130 = vmatprep.mubr.f32.mxu0 0.0
    %131 = vmatmul.mubr.f32.gmra.mrb[0].mxu0 %v55
    %v132 = vpop.f32.mrb[0].mxu0
    %v133 = vadd.f32 %v48, %v132
    %v134 = vpop.f32.mrb[0].mxu0
    %135 = vdwg.mxu0
    %v136 = vadd.f32 %v128, %v36
    %v137 = vadd.f32 %v133, %v37
    %v138 = vld [vmem:[%s1] sm:$0xff]
    %v139 = vld [vmem:[%s1 + $0x8] sm:$0xf]
    %v140 = vld [vmem:[%s6] sm:$0x1]
    %142 = vset.pattern.permute.xlu0 0
    %143 = vperm.xlu0 %142, %v138
    %v144 = vpop.permute.xlu0 %143
    %147 = vset.pattern.permute.xlu0 0
    %148 = vperm.xlu0 %147, %v139
    %v149 = vpop.permute.xlu0 %148
    %v152 = vlaneseq
    %v153 = vshrl.u32 %v152, 7
    %v154 = vsub.s32 0, %v153
    %v155 = vrot.slane %v140, %v154
    %v157 = vmul.f32 %v144, %v155
    %v158 = vmul.f32 %v149, %v155
    %v159 = vld [vmem:[%s7] sm:$0x1]
    %v161 = vlaneseq
    %v162 = vshrl.u32 %v161, 7
    %v163 = vsub.s32 0, %v162
    %v164 = vrot.slane %v159, %v163
    %v166 = vadd.f32 %v157, %v164
    %v167 = vadd.f32 %v158, %v164
    %v168 = vadd.f32 %v166, %v36
    %v169 = vadd.f32 %v167, %v37
    %v170 = vld [vmem:[%s3] sm:$0xff]
    %v171 = vld [vmem:[%s3 + $0x8] sm:$0xf]
    %v172 = vadd.f32 %v170, %v36
    %v173 = vadd.f32 %v171, %v37
    %vm174 = vcmask 261120
    %v175 = vsel %vm174, %v168, 0.0
    %176 = vadd.xlane.f32.xlu0 %v175
    %v177 = vpop.xlane.xlu0 %176
    %vm178 = vcmask 257024
    %v179 = vsel %vm178, %v169, 0.0
    %180 = vadd.xlane.f32.xlu0 %v179
    %v181 = vpop.xlane.xlu0 %180
    %v182 = vrcp.pop 32.0
    %v183 = vmul.f32 %v177, %v182
    %v184 = vmul.f32 %v181, %v182
    %v185 = vsub.f32 %v168, %v183
    %v186 = vsub.f32 %v169, %v184
    %v187 = vmul.f32 %v185, %v185
    %v188 = vmul.f32 %v186, %v186
    %v189 = vsel %vm174, %v187, 0.0
    %190 = vadd.xlane.f32.xlu0 %v189
    %v191 = vpop.xlane.xlu0 %190
    %v192 = vsel %vm178, %v188, 0.0
    %193 = vadd.xlane.f32.xlu0 %v192
    %v194 = vpop.xlane.xlu0 %193
    %v195 = vmul.f32 %v191, %v182
    %v196 = vmul.f32 %v194, %v182
    %v197 = vadd.f32 %v195, 1e-05
    %v198 = vadd.f32 %v196, 1e-05
    %v199 = vrsqrt.pop %v197
    %v200 = vrsqrt.pop %v198
    %v201 = vmul.f32 %v185, %v199
    %v202 = vmul.f32 %v186, %v200
    %v204 = vlaneseq
    %v205 = vshrl.u32 %v204, 7
    %v206 = vsub.s32 0, %v205
    %v207 = vrot.slane %v38, %v206
    %v209 = vmul.f32 %v201, %v207
    %v210 = vmul.f32 %v202, %v207
    %v212 = vlaneseq
    %v213 = vshrl.u32 %v212, 7
    %v214 = vsub.s32 0, %v213
    %v215 = vrot.slane %v39, %v214
    %v217 = vadd.f32 %v209, %v215
    %v218 = vadd.f32 %v210, %v215
    %219 = vst.msk [vmem:[#allocation2] sm:$0xff] %vm174, %v217
    %220 = vst.msk [vmem:[#allocation2 + $0x8] sm:$0xf] %vm178, %v218
    %v221 = vsel %vm174, %v136, 0.0
    %222 = vadd.xlane.f32.xlu0 %v221
    %v223 = vpop.xlane.xlu0 %222
    %v224 = vsel %vm178, %v137, 0.0
    %225 = vadd.xlane.f32.xlu0 %v224
    %v226 = vpop.xlane.xlu0 %225
    %v227 = vmul.f32 %v223, %v182
    %v228 = vmul.f32 %v226, %v182
    %v229 = vsub.f32 %v136, %v227
    %v230 = vsub.f32 %v137, %v228
    %v231 = vmul.f32 %v229, %v229
    %v232 = vmul.f32 %v230, %v230
    %v233 = vsel %vm174, %v231, 0.0
    %234 = vadd.xlane.f32.xlu0 %v233
    %v235 = vpop.xlane.xlu0 %234
    %v236 = vsel %vm178, %v232, 0.0
    %237 = vadd.xlane.f32.xlu0 %v236
    %v238 = vpop.xlane.xlu0 %237
    %v239 = vmul.f32 %v235, %v182
    %v240 = vmul.f32 %v238, %v182
    %v241 = vadd.f32 %v239, 1e-05
    %v242 = vadd.f32 %v240, 1e-05
    %v243 = vrsqrt.pop %v241
    %v244 = vrsqrt.pop %v242
    %v245 = vmul.f32 %v229, %v243
    %v246 = vmul.f32 %v230, %v244
    %v247 = vmul.f32 %v245, %v207
    %v248 = vmul.f32 %v246, %v207
    %v249 = vadd.f32 %v247, %v215
    %v250 = vadd.f32 %v248, %v215
    %s251 = scalar_lea.vmem [#allocation2], 16
    %252 = vst.msk [vmem:[%s251] sm:$0xff] %vm174, %v249
    %253 = vst.msk [vmem:[%s251 + $0x8] sm:$0xf] %vm178, %v250
    %v254 = vsel %vm174, %v172, 0.0
    %255 = vadd.xlane.f32.xlu0 %v254
    %v256 = vpop.xlane.xlu0 %255
    %v257 = vsel %vm178, %v173, 0.0
    %258 = vadd.xlane.f32.xlu0 %v257
    %v259 = vpop.xlane.xlu0 %258
    %v260 = vmul.f32 %v256, %v182
    %v261 = vmul.f32 %v259, %v182
    %v262 = vsub.f32 %v172, %v260
    %v263 = vsub.f32 %v173, %v261
    %v264 = vmul.f32 %v262, %v262
    %v265 = vmul.f32 %v263, %v263
    %v266 = vsel %vm174, %v264, 0.0
    %267 = vadd.xlane.f32.xlu0 %v266
    %v268 = vpop.xlane.xlu0 %267
    %v269 = vsel %vm178, %v265, 0.0
    %270 = vadd.xlane.f32.xlu0 %v269
    %v271 = vpop.xlane.xlu0 %270
    %v272 = vmul.f32 %v268, %v182
    %v273 = vmul.f32 %v271, %v182
    %v274 = vadd.f32 %v272, 1e-05
    %v275 = vadd.f32 %v273, 1e-05
    %v276 = vrsqrt.pop %v274
    %v277 = vrsqrt.pop %v275
    %v278 = vmul.f32 %v262, %v276
    %v279 = vmul.f32 %v263, %v277
    %v280 = vmul.f32 %v278, %v207
    %v281 = vmul.f32 %v279, %v207
    %v282 = vadd.f32 %v280, %v215
    %v283 = vadd.f32 %v281, %v215
    %s284 = scalar_lea.vmem [#allocation2], 32
    %285 = vst.msk [vmem:[%s284] sm:$0xff] %vm174, %v282
    %286 = vst.msk [vmem:[%s284 + $0x8] sm:$0xf] %vm178, %v283
    // Predicated region
    $region42: #{tpu_custom_call.1} parent=1 // pred_check
      _
    $region43: #{tpu_custom_call.1} parent=1 // pred_check_branch
      %288 = sbr.rel (0) target = $region45
    $region44: #{tpu_custom_call.1} parent=1 // pred_region
      %s290 = ssub.s32 768, 768
      %291 = vsyncadd [#allocation3], %s290
      %s292 = sshll.u32 [#allocation2], 4
      %s293 = int_to_ptr.vmem [resolvable:$true] %s292
      %298 = dma.vmem_to_hbm [thread:$0]  %s293, 768, %s10, [#allocation3], 128, 128, 8
    $region45: #{tpu_custom_call.1} parent=1 // pred_fallthru
      _
    // Predicated region
    $region46: #{tpu_custom_call.1} parent=1 // pred_check
      _
    $region47: #{tpu_custom_call.1} parent=1 // pred_check_branch
      %300 = sbr.rel (0) target = $region49
    $region48: #{tpu_custom_call.1} parent=1 // pred_region
      %301 = dma.done [#allocation3], 768
    $region49: #{tpu_custom_call.1} parent=1 // pred_fallthru
      _
    %302 = vsyncpa [#allocation3], 1

</llo_original>
